<compile_context>
chip_gen: v6e
topology: v6e:2x2x1
jax: 0.10.0
libtpu: 0.0.40
codegen_flags: <defaults>
</compile_context>

<pallas_src>
import functools

import jax
import jax.numpy as jnp
from jax.experimental import pallas as pl
from jax.experimental.pallas import tpu as pltpu

_LANE = 128


def _fake_quant_kernel(scale_ref, zp_ref, x_ref, q_ref, *, exact_division):
    # scale / zero_point live in SMEM as (1,) f32 scalars.
    scale = scale_ref[0]
    zp = zp_ref[0]
    x = x_ref[...].astype(jnp.float32)
    if exact_division:
        y = x / scale                  # true division (bit parity with torch)
    else:
        y = x * (1.0 / scale)          # scalar reciprocal once per block, VPU mul per elem
    q_ref[...] = jnp.round(y + zp).astype(q_ref.dtype)


def fake_quantization(
    x,
    scale,
    zero_point,
    *,
    target_block_bytes=4 * 1024 * 1024,
    exact_division=False,
):
    """Pallas implementation of FakeQuantization.forward.

    x          : float array of any shape (e.g. NCHW).
    scale      : scalar float parameter.
    zero_point : scalar float parameter.
    Returns (q_x, scale) with q_x the same shape/dtype as x.
    """
    orig_shape = x.shape
    orig_dtype = x.dtype
    total = int(x.size)
    itemsize = jnp.dtype(orig_dtype).itemsize
    # dtype-dependent sublane packing: 8 rows (f32), 16 (bf16/fp16), 32 (int8/fp8)
    pack = 8 * max(1, 4 // itemsize)

    scale_arr = jnp.asarray(scale, jnp.float32).reshape((1,))
    zp_arr = jnp.asarray(zero_point, jnp.float32).reshape((1,))

    kernel = functools.partial(_fake_quant_kernel, exact_division=exact_division)
    scalar_specs = [
        pl.BlockSpec(memory_space=pltpu.SMEM),  # scale
        pl.BlockSpec(memory_space=pltpu.SMEM),  # zero_point
    ]
    compiler_params = pltpu.CompilerParams(
        dimension_semantics=("parallel",),       # megacore sharding where available
        vmem_limit_bytes=48 * 1024 * 1024,       # headroom under v7x 64 MiB/TC
    )
    cost = pl.CostEstimate(
        flops=3 * total,
        transcendentals=0,
        bytes_accessed=2 * total * itemsize,
    )

    x_flat = jnp.reshape(x, (-1,))

    if total % _LANE == 0:
        # Lane-dense 2-D slab, no padding required.
        rows = total // _LANE
        target_rows = max(pack, (target_block_bytes // (_LANE * itemsize)) // pack * pack)
        row_tile = min(target_rows, rows)        # full-extent block is always legal
        x2d = jnp.reshape(x_flat, (rows, _LANE))
        q2d = pl.pallas_call(
            kernel,
            out_shape=jax.ShapeDtypeStruct((rows, _LANE), orig_dtype),
            grid_spec=pltpu.PrefetchScalarGridSpec(
                num_scalar_prefetch=0,
                grid=(pl.cdiv(rows, row_tile),),
                in_specs=scalar_specs
                + [pl.BlockSpec((row_tile, _LANE), lambda i: (i, 0))],
                out_specs=pl.BlockSpec((row_tile, _LANE), lambda i: (i, 0)),
            ),
            compiler_params=compiler_params,
            cost_estimate=cost,
        )(scale_arr, zp_arr, x2d)
        q_flat = jnp.reshape(q2d, (-1,))
    else:
        # Ragged element count: tile the flat 1-D array directly.  No
        # full-tensor pad or post-slice; Pallas masks the ragged last block.
        max_elems = 64 * 1024                    # conservative cap for rank-1 VMEM blocks
        blk_unit = pack * _LANE
        tgt_elems = max(blk_unit, (target_block_bytes // itemsize) // blk_unit * blk_unit)
        block_elems = min(min(tgt_elems, max_elems), pl.cdiv(total, blk_unit) * blk_unit)
        q_flat = pl.pallas_call(
            kernel,
            out_shape=jax.ShapeDtypeStruct((total,), orig_dtype),
            grid_spec=pltpu.PrefetchScalarGridSpec(
                num_scalar_prefetch=0,
                grid=(pl.cdiv(total, block_elems),),
                in_specs=scalar_specs
                + [pl.BlockSpec((block_elems,), lambda i: (i,))],
                out_specs=pl.BlockSpec((block_elems,), lambda i: (i,)),
            ),
            compiler_params=compiler_params,
            cost_estimate=cost,
        )(scale_arr, zp_arr, x_flat)

    q_x = jnp.reshape(q_flat, orig_shape)
    return q_x, jnp.asarray(scale, jnp.float32)


if __name__ == "__main__":
    key = jax.random.PRNGKey(0)
    scale = 0.5
    zero_point = 2.0

    # --- main test: NCHW input, element count divides 128 -> 2-D slab path.
    x = jax.random.normal(key, (2, 4, 16, 16), dtype=jnp.float32)
    q_x, s = fake_quantization(x, scale, zero_point)
    q_x = jax.block_until_ready(q_x)
    s = jax.block_until_ready(s)
    ref = jnp.round(x / scale + zero_point)
    assert q_x.shape == x.shape and q_x.dtype == x.dtype
    assert jnp.allclose(q_x, ref), "mismatch vs reference (main f32 path)"
    assert jnp.allclose(s, jnp.float32(scale))

    # --- bf16 test: exercises 16-row sublane packing + in-register f32 upcast.
    xb = jax.random.normal(jax.random.PRNGKey(2), (2, 4, 16, 16), dtype=jnp.bfloat16)
    q_xb, _ = fake_quantization(xb, scale, zero_point)
    q_xb = jax.block_until_ready(q_xb)
    refb = jnp.round(xb.astype(jnp.float32) / scale + zero_point).astype(jnp.bfloat16)
    assert q_xb.dtype == jnp.bfloat16
    assert jnp.allclose(q_xb.astype(jnp.float32), refb.astype(jnp.float32)), \
        "mismatch vs reference (bf16 path)"

    # --- ragged test: size not a multiple of 128 -> 1-D path, multi-step grid
    #     with a masked ragged last block (no pad / slice outside the kernel).
    x2 = jax.random.normal(jax.random.PRNGKey(1), (3, 5, 17, 19), dtype=jnp.float32)
    q_x2, _ = fake_quantization(x2, scale, zero_point, target_block_bytes=8192)
    q_x2 = jax.block_until_ready(q_x2)
    ref2 = jnp.round(x2 / scale + zero_point)
    assert q_x2.shape == x2.shape
    assert jnp.allclose(q_x2, ref2), "mismatch vs reference (ragged 1-D path)"

    # --- exact-division (bit-parity) flag.
    q_x3, _ = fake_quantization(x, scale, zero_point, exact_division=True)
    q_x3 = jax.block_until_ready(q_x3)
    assert jnp.allclose(q_x3, ref), "mismatch vs reference (exact-division path)"

    print("KERNEL_OK")
</pallas_src>

<mosaic_0001>
module attributes {stable_mosaic.version = 11 : i64} {
  func.func @_fake_quant_kernel(%arg0: i32, %arg1: memref<1xf32, #tpu.memory_space<smem>>, %arg2: memref<1xf32, #tpu.memory_space<smem>>, %arg3: memref<16x128xf32, #tpu.memory_space<vmem>>, %arg4: memref<16x128xf32, #tpu.memory_space<vmem>>) attributes {dimension_semantics = [#tpu.dimension_semantics<parallel>], iteration_bounds = array<i64: 1>, scalar_prefetch = 0 : i64, scratch_operands = 0 : i64, tpu.core_type = #tpu.core_type<tc>, window_params = [{transform_indices = @transform_0, window_bounds = array<i64: 1>}, {transform_indices = @transform_1, window_bounds = array<i64: 1>}, {transform_indices = @transform_2, window_bounds = array<i64: 16, 128>}, {transform_indices = @transform_3, window_bounds = array<i64: 16, 128>}]} {
    %c0 = arith.constant 0 : index
    %0 = memref.load %arg1[%c0] : memref<1xf32, #tpu.memory_space<smem>>
    %c0_0 = arith.constant 0 : index
    %1 = memref.load %arg2[%c0_0] : memref<1xf32, #tpu.memory_space<smem>>
    %c0_1 = arith.constant 0 : index
    %c0_2 = arith.constant 0 : index
    %2 = vector.load %arg3[%c0_1, %c0_2] : memref<16x128xf32, #tpu.memory_space<vmem>>, vector<16x128xf32>
    %cst = arith.constant 1.000000e+00 : f32
    %3 = arith.divf %cst, %0 : f32
    %4 = vector.broadcast %3 : f32 to vector<16x128xf32>
    %5 = arith.mulf %2, %4 : vector<16x128xf32>
    %6 = vector.broadcast %1 : f32 to vector<16x128xf32>
    %7 = arith.addf %5, %6 : vector<16x128xf32>
    %8 = math.roundeven %7 : vector<16x128xf32>
    %c0_3 = arith.constant 0 : index
    %c0_4 = arith.constant 0 : index
    %9 = vector.load %arg4[%c0_3, %c0_4] : memref<16x128xf32, #tpu.memory_space<vmem>>, vector<16x128xf32>
    tpu.vector_store %arg4[%c0_3, %c0_4], %8 {strides = array<i32>} : memref<16x128xf32, #tpu.memory_space<vmem>>, vector<16x128xf32>,
    return
  }
  func.func @transform_0(%arg0: i32) -> i32 {
    %c0_i32 = arith.constant 0 : i32
    %c0_i32_0 = arith.constant 0 : i32
    return %c0_i32 : i32
  }
  func.func @transform_1(%arg0: i32) -> i32 {
    %c0_i32 = arith.constant 0 : i32
    %c0_i32_0 = arith.constant 0 : i32
    return %c0_i32 : i32
  }
  func.func @transform_2(%arg0: i32) -> (i32, i32) {
    %c0_i32 = arith.constant 0 : i32
    %c0_i32_0 = arith.constant 0 : i32
    return %arg0, %c0_i32 : i32, i32
  }
  func.func @transform_3(%arg0: i32) -> (i32, i32) {
    %c0_i32 = arith.constant 0 : i32
    %c0_i32_0 = arith.constant 0 : i32
    return %arg0, %c0_i32 : i32, i32
  }
}

</mosaic_0001>

<llo_original>
// kernel: tpu_custom_call.1
$region0: #{tpu_custom_call.1}
  #allocation0 [shape = 'u32[]', space=smem, size = 0x4, offset = 0x4, fixed_abs, tag = 'smem constant byte address 0x4 - core index']
  #allocation1 [shape = 'u32[144,128]{1,0:T(1,128)}', space=vmem, size = 0x12000, scoped, tag = 'internal scratch']
  #allocation2 [shape = 'f32[1]{0:T(128)S(6)}', space=smem, size = 0x200, scoped, tag = 'scoped memory for tpu_custom_call.1']
  #allocation3 [shape = 'f32[1]{0:T(128)S(6)}', space=smem, size = 0x200, scoped, tag = 'scoped memory for tpu_custom_call.1']
  %s0 = inlined_call_operand.<no memory space> [shape: f32[1], index: 0, kind: input, shape index: {}]
  %s1 = inlined_call_operand.<no memory space> [shape: f32[1], index: 1, kind: input, shape index: {}]
  %s2 = inlined_call_operand.hbm [shape: f32[16,128], index: 2, kind: input, shape index: {}]
  %s3 = inlined_call_operand.hbm [shape: f32[16,128], index: 3, kind: output, shape index: {}]
  %s4 = sld [smem:[#allocation0]]
  $region26: #{tpu_custom_call.1} parent=0
    _
  %s6 = ssub.s32 1, %s4
  %s7 = scalar_select 0, %s6, %s4
  %8 = sst [smem:[#allocation2]] %s0
  %9 = sst [smem:[#allocation3]] %s1
  $region1: #{tpu_custom_call.1} parent=0
    #allocation4 [shape = 'u8[8192]{0}', space=vmem, size = 0x2000, scoped, tag = 'input window, operand 2, single buffered']
    #allocation5 [shape = 's32[1]{0}', space=sflag, size = 0x4, scoped, tag = 'scoped memory for tpu_custom_call.1']
    #allocation6 [shape = 's32[1]{0}', space=sflag, size = 0x4, scoped, tag = 'scoped memory for tpu_custom_call.1']
    #allocation7 [shape = 'u8[8192]{0}', space=vmem, size = 0x2000, scoped, tag = 'output window, operand 0, single buffered']
    %10 = vsyncpa [#allocation5], 0
    %11 = vsyncpa [#allocation6], 0
    // Predicated region
    $region2: #{tpu_custom_call.1} parent=1 // pred_check
      _
    $region3: #{tpu_custom_call.1} parent=1 // pred_check_branch
      %13 = sbr.rel (0) target = $region5
    $region4: #{tpu_custom_call.1} parent=1 // pred_region
      _
    $region5: #{tpu_custom_call.1} parent=1 // pred_fallthru
      _
    // Predicated region
    $region6: #{tpu_custom_call.1} parent=1 // pred_check
      _
    $region7: #{tpu_custom_call.1} parent=1 // pred_check_branch
      %15 = sbr.rel (0) target = $region9
    $region8: #{tpu_custom_call.1} parent=1 // pred_region
      _
    $region9: #{tpu_custom_call.1} parent=1 // pred_fallthru
      _
    // Predicated region
    $region10: #{tpu_custom_call.1} parent=1 // pred_check
      _
    $region11: #{tpu_custom_call.1} parent=1 // pred_check_branch
      %17 = sbr.rel (0) target = $region13
    $region12: #{tpu_custom_call.1} parent=1 // pred_region
      %s19 = ssub.s32 256, 256
      %20 = vsyncadd [#allocation5], %s19
      %s21 = sshll.u32 [#allocation4], 4
      %s22 = int_to_ptr.vmem [resolvable:$true] %s21
      %27 = dma.hbm_to_vmem [thread:$0]  %s2, 256, %s22, [#allocation5], 128, 128, 8
    $region13: #{tpu_custom_call.1} parent=1 // pred_fallthru
      _
    // Predicated region
    $region14: #{tpu_custom_call.1} parent=1 // pred_check
      _
    $region15: #{tpu_custom_call.1} parent=1 // pred_check_branch
      %29 = sbr.rel (0) target = $region17
    $region16: #{tpu_custom_call.1} parent=1 // pred_region
      %30 = dma.done [#allocation5], 256
    $region17: #{tpu_custom_call.1} parent=1 // pred_fallthru
      _
    %s31 = sld [smem:[#allocation2]]
    %s32 = sld [smem:[#allocation3]]
    %v33 = vld [vmem:[#allocation4] sm:$0xff]
    %v34 = vld [vmem:[#allocation4 + $0x8] sm:$0xff]
    %v35 = vstv %s31
    %v36 = vrcp.pop %v35
    %s37 = vtos %v36
    %v38 = vstv %s37
    %v39 = vmul.f32 %v33, %v38
    %v40 = vmul.f32 %v34, %v38
    %v41 = vstv %s32
    %v42 = vadd.f32 %v39, %v41
    %v43 = vadd.f32 %v40, %v41
    %v44 = vround.ne.pseudo %v42
    %v45 = vround.ne.pseudo %v43
    %46 = vst [vmem:[#allocation7] sm:$0xff] %v44
    %47 = vst [vmem:[#allocation7 + $0x8] sm:$0xff] %v45
    // Predicated region
    $region18: #{tpu_custom_call.1} parent=1 // pred_check
      _
    $region19: #{tpu_custom_call.1} parent=1 // pred_check_branch
      %49 = sbr.rel (0) target = $region21
    $region20: #{tpu_custom_call.1} parent=1 // pred_region
      %s51 = ssub.s32 256, 256
      %52 = vsyncadd [#allocation6], %s51
      %s53 = sshll.u32 [#allocation7], 4
      %s54 = int_to_ptr.vmem [resolvable:$true] %s53
      %59 = dma.vmem_to_hbm [thread:$0]  %s54, 256, %s3, [#allocation6], 128, 128, 8
    $region21: #{tpu_custom_call.1} parent=1 // pred_fallthru
      _
    // Predicated region
    $region22: #{tpu_custom_call.1} parent=1 // pred_check
      _
    $region23: #{tpu_custom_call.1} parent=1 // pred_check_branch
      %61 = sbr.rel (0) target = $region25
    $region24: #{tpu_custom_call.1} parent=1 // pred_region
      %62 = dma.done [#allocation6], 256
    $region25: #{tpu_custom_call.1} parent=1 // pred_fallthru
      _
    %63 = vsyncpa [#allocation5], 1
    %64 = vsyncpa [#allocation6], 1

</llo_original>
